<compile_context>
chip_gen: v7x
topology: tpu7x:2x2x1
jax: 0.10.0
libtpu: 0.0.40
codegen_flags: <defaults>
</compile_context>

<pallas_src>
import jax
import jax.numpy as jnp
from jax.experimental import pallas as pl
from jax.experimental.pallas import tpu as pltpu


# ----------------------------- Pallas kernel --------------------------------
def _gcn2_fused_kernel(a_ref, x_ref, w1_ref, b1_ref, w2_ref, b2_ref, o_ref):
    """out = A_hat @ relu(A_hat @ (x @ W1) + b1) @ W2  ... + b2 (fused).

    a/x/w1/w2 are bf16, biases/accumulation/output are f32.
    """
    a = a_ref[...]                                                   # bf16 [N, N]

    # ---- layer 1: feature transform first (N*Cin*Chid), then aggregate the
    # N x N adjacency against the narrow hidden width (N*N*Chid).
    xw1 = jnp.dot(x_ref[...], w1_ref[...],
                  preferred_element_type=jnp.float32)                # f32 acc
    h1 = jnp.dot(a, xw1.astype(jnp.bfloat16),
                 preferred_element_type=jnp.float32)
    h1 = jnp.maximum(h1 + b1_ref[...], 0.0)                          # f32 VPU

    # ---- layer 2 directly on the VMEM-resident intermediate (no HBM trip).
    xw2 = jnp.dot(h1.astype(jnp.bfloat16), w2_ref[...],
                  preferred_element_type=jnp.float32)
    out = jnp.dot(a, xw2.astype(jnp.bfloat16),
                  preferred_element_type=jnp.float32)
    o_ref[...] = (out + b2_ref[...]).astype(o_ref.dtype)


# ------------------------------ wrapper --------------------------------------
def _round_up(x, m):
    return ((x + m - 1) // m) * m


def _pad2(a, rows, cols):
    r, c = a.shape
    return jnp.pad(a, ((0, rows - r), (0, cols - c)))


def gcn_forward(params, x_p, a_p):
    """Fused two-layer GCN forward on PRE-PADDED inputs.

    x_p:  [n_pad, ci_pad] bf16, a_p: [n_pad, n_pad] bf16 (padding is zeros).
    Returns the PADDED output [n_pad, co_pad] float32 (caller slices if needed).
    """
    n_pad, ci_pad = x_p.shape
    ch_pad = params["w1"].shape[1]
    co_pad = params["w2"].shape[1]

    flops = (2 * n_pad * ci_pad * ch_pad + 2 * n_pad * n_pad * ch_pad
             + 2 * n_pad * ch_pad * co_pad + 2 * n_pad * n_pad * co_pad)
    bytes_accessed = (2 * (a_p.size + x_p.size + params["w1"].size
                           + params["w2"].size)
                      + 4 * (params["b1"].size + params["b2"].size)
                      + 4 * n_pad * co_pad)

    # VMEM budget: all operands + f32/bf16 intermediates + output, x2 headroom,
    # clamped to a limit that is safe on every generation (v7x: 64 MiB phys).
    interm_bytes = (n_pad * ch_pad * (4 + 4 + 2)        # xw1, h1, h1_bf16
                    + n_pad * co_pad * (4 + 2 + 4))     # xw2 f32/bf16, out f32
    vmem_bytes = bytes_accessed + interm_bytes
    vmem_limit = int(min(max(2 * vmem_bytes, 4 << 20), 48 << 20))

    vmem_spec = pl.BlockSpec(memory_space=pltpu.MemorySpace.VMEM)
    return pl.pallas_call(
        _gcn2_fused_kernel,
        out_shape=jax.ShapeDtypeStruct((n_pad, co_pad), jnp.float32),
        in_specs=[vmem_spec] * 6,          # whole arrays, no grid, no pipeline
        out_specs=vmem_spec,
        compiler_params=pltpu.CompilerParams(vmem_limit_bytes=vmem_limit),
        cost_estimate=pl.CostEstimate(
            flops=flops, transcendentals=0, bytes_accessed=bytes_accessed),
    )(a_p, x_p, params["w1"], params["b1"], params["w2"], params["b2"])


# ------------------------------ JAX glue -------------------------------------
def build_normalized_adjacency(edge_index, num_nodes, num_nodes_padded=None):
    """Dense A_hat = D^{-1/2} (A + I) D^{-1/2} matching PyG gcn_norm, built
    directly into a pre-padded [n_pad, n_pad] buffer (padding stays zero).

    * duplicate (non-self-loop) edges scatter-ADD (they count in both the
      message weight and the degree, as in PyG),
    * explicit self-loops are dropped and exactly one unit self-loop per node
      is added (add_remaining_self_loops with fill_value=1, unit edge weight).
    """
    n_pad = num_nodes if num_nodes_padded is None else num_nodes_padded
    src, dst = edge_index[0], edge_index[1]
    w = jnp.where(src != dst, 1.0, 0.0).astype(jnp.float32)
    # A[i, j] = total weight of messages j -> i (source_to_target flow).
    a = jnp.zeros((n_pad, n_pad), jnp.float32).at[dst, src].add(w)
    diag = jnp.arange(num_nodes)
    a = a.at[diag, diag].add(1.0)                 # self-loops only on real nodes
    deg = jnp.sum(a, axis=1)
    d_inv_sqrt = jnp.where(deg > 0.0, jax.lax.rsqrt(deg), 0.0)
    return d_inv_sqrt[:, None] * a * d_inv_sqrt[None, :]


def init_params(key, in_channels, hidden_channels, out_channels):
    """Glorot-uniform weights (PyG GCNConv init), zero bias — PRE-PADDED to
    lane-dense 128 multiples and pre-cast: weights bf16, biases f32."""
    k1, k2 = jax.random.split(key)
    ci_pad = _round_up(in_channels, 128)
    ch_pad = _round_up(hidden_channels, 128)
    co_pad = _round_up(out_channels, 128)

    def glorot(k, fan_in, fan_out):
        lim = jnp.sqrt(6.0 / (fan_in + fan_out))
        return jax.random.uniform(k, (fan_in, fan_out), jnp.float32, -lim, lim)

    w1 = _pad2(glorot(k1, in_channels, hidden_channels), ci_pad, ch_pad)
    w2 = _pad2(glorot(k2, hidden_channels, out_channels), ch_pad, co_pad)
    return {
        "w1": w1.astype(jnp.bfloat16),
        "b1": jnp.zeros((1, ch_pad), jnp.float32),
        "w2": w2.astype(jnp.bfloat16),
        "b2": jnp.zeros((1, co_pad), jnp.float32),
    }


# --------------------------------- main --------------------------------------
if __name__ == "__main__":
    key = jax.random.PRNGKey(0)
    k_x, k_e, k_p = jax.random.split(key, 3)

    num_nodes = 32
    in_channels, hidden_channels, out_channels = 16, 32, 8
    num_edges = 64

    n_pad = _round_up(num_nodes, 128)
    ci_pad = _round_up(in_channels, 128)

    # deterministic synthetic graph + node features
    x = jax.random.normal(k_x, (num_nodes, in_channels), jnp.float32)
    edge_index = jax.random.randint(k_e, (2, num_edges), 0, num_nodes,
                                    dtype=jnp.int32)

    # one-time preprocessing (outside the forward path)
    a_hat_f32 = build_normalized_adjacency(edge_index, num_nodes, n_pad)
    a_p = a_hat_f32.astype(jnp.bfloat16)
    x_p = _pad2(x, n_pad, ci_pad).astype(jnp.bfloat16)
    params = init_params(k_p, in_channels, hidden_channels, out_channels)

    fwd = jax.jit(gcn_forward)
    out_p = jax.block_until_ready(fwd(params, x_p, a_p))
    out = out_p[:num_nodes, :out_channels]

    assert out.shape == (num_nodes, out_channels)
    assert jnp.all(jnp.isfinite(out))
    # padded rows/cols of the output must be untouched by real data
    assert jnp.all(out_p[num_nodes:, :] == out_p[num_nodes:, :1])  # constant rows

    # cross-check against a plain-JAX f32 reference built from the same
    # (bf16-rounded) operands; tolerance covers bf16 intermediate rounding.
    a_ref = a_hat_f32[:num_nodes, :num_nodes]
    w1_ref = params["w1"][:in_channels, :hidden_channels].astype(jnp.float32)
    w2_ref = params["w2"][:hidden_channels, :out_channels].astype(jnp.float32)
    b1_ref = params["b1"][:, :hidden_channels]
    b2_ref = params["b2"][:, :out_channels]
    h_ref = jnp.maximum(a_ref @ (x @ w1_ref) + b1_ref, 0.0)
    out_ref = a_ref @ (h_ref @ w2_ref) + b2_ref
    assert jnp.allclose(out, out_ref, atol=5e-2, rtol=5e-2)

    print("KERNEL_OK")
</pallas_src>

<mosaic_0001>
module attributes {stable_mosaic.version = 11 : i64} {
  func.func @_gcn2_fused_kernel(%arg0: memref<128x128xbf16, #tpu.memory_space<vmem>>, %arg1: memref<128x128xbf16, #tpu.memory_space<vmem>>, %arg2: memref<128x128xbf16, #tpu.memory_space<vmem>>, %arg3: memref<1x128xf32, #tpu.memory_space<vmem>>, %arg4: memref<128x128xbf16, #tpu.memory_space<vmem>>, %arg5: memref<1x128xf32, #tpu.memory_space<vmem>>, %arg6: memref<128x128xf32, #tpu.memory_space<vmem>>) attributes {dimension_semantics = [], scalar_prefetch = 0 : i64, scratch_operands = 0 : i64, tpu.core_type = #tpu.core_type<tc>} {
    %c0 = arith.constant 0 : index
    %c0_0 = arith.constant 0 : index
    %0 = vector.load %arg0[%c0, %c0_0] : memref<128x128xbf16, #tpu.memory_space<vmem>>, vector<128x128xbf16>
    %c0_1 = arith.constant 0 : index
    %c0_2 = arith.constant 0 : index
    %1 = vector.load %arg1[%c0_1, %c0_2] : memref<128x128xbf16, #tpu.memory_space<vmem>>, vector<128x128xbf16>
    %c0_3 = arith.constant 0 : index
    %c0_4 = arith.constant 0 : index
    %2 = vector.load %arg2[%c0_3, %c0_4] : memref<128x128xbf16, #tpu.memory_space<vmem>>, vector<128x128xbf16>
    %cst = arith.constant dense<0.000000e+00> : vector<128x128xf32>
    %3 = tpu.matmul %1, %2, %cst {dimension_numbers = #tpu.dot_dimension_numbers<[1], [0], [0], [1], [0, 0, 1, 1], [], []>} : vector<128x128xbf16>, vector<128x128xbf16>, vector<128x128xf32> -> vector<128x128xf32>
    %4 = arith.truncf %3 : vector<128x128xf32> to vector<128x128xbf16>
    %cst_5 = arith.constant dense<0.000000e+00> : vector<128x128xf32>
    %5 = tpu.matmul %0, %4, %cst_5 {dimension_numbers = #tpu.dot_dimension_numbers<[1], [0], [0], [1], [0, 0, 1, 1], [], []>} : vector<128x128xbf16>, vector<128x128xbf16>, vector<128x128xf32> -> vector<128x128xf32>
    %c0_6 = arith.constant 0 : index
    %c0_7 = arith.constant 0 : index
    %6 = vector.load %arg3[%c0_6, %c0_7] : memref<1x128xf32, #tpu.memory_space<vmem>>, vector<1x128xf32>
    %7 = vector.broadcast %6 : vector<1x128xf32> to vector<128x128xf32>
    %8 = arith.addf %5, %7 : vector<128x128xf32>
    %cst_8 = arith.constant 0.000000e+00 : f32
    %9 = vector.broadcast %cst_8 : f32 to vector<128x128xf32>
    %10 = arith.maximumf %8, %9 : vector<128x128xf32>
    %11 = arith.truncf %10 : vector<128x128xf32> to vector<128x128xbf16>
    %c0_9 = arith.constant 0 : index
    %c0_10 = arith.constant 0 : index
    %12 = vector.load %arg4[%c0_9, %c0_10] : memref<128x128xbf16, #tpu.memory_space<vmem>>, vector<128x128xbf16>
    %cst_11 = arith.constant dense<0.000000e+00> : vector<128x128xf32>
    %13 = tpu.matmul %11, %12, %cst_11 {dimension_numbers = #tpu.dot_dimension_numbers<[1], [0], [0], [1], [0, 0, 1, 1], [], []>} : vector<128x128xbf16>, vector<128x128xbf16>, vector<128x128xf32> -> vector<128x128xf32>
    %14 = arith.truncf %13 : vector<128x128xf32> to vector<128x128xbf16>
    %cst_12 = arith.constant dense<0.000000e+00> : vector<128x128xf32>
    %15 = tpu.matmul %0, %14, %cst_12 {dimension_numbers = #tpu.dot_dimension_numbers<[1], [0], [0], [1], [0, 0, 1, 1], [], []>} : vector<128x128xbf16>, vector<128x128xbf16>, vector<128x128xf32> -> vector<128x128xf32>
    %c0_13 = arith.constant 0 : index
    %c0_14 = arith.constant 0 : index
    %16 = vector.load %arg5[%c0_13, %c0_14] : memref<1x128xf32, #tpu.memory_space<vmem>>, vector<1x128xf32>
    %17 = vector.broadcast %16 : vector<1x128xf32> to vector<128x128xf32>
    %18 = arith.addf %15, %17 : vector<128x128xf32>
    %c0_15 = arith.constant 0 : index
    %c0_16 = arith.constant 0 : index
    %19 = vector.load %arg6[%c0_15, %c0_16] : memref<128x128xf32, #tpu.memory_space<vmem>>, vector<128x128xf32>
    tpu.vector_store %arg6[%c0_15, %c0_16], %18 {strides = array<i32>} : memref<128x128xf32, #tpu.memory_space<vmem>>, vector<128x128xf32>,
    return
  }
}

</mosaic_0001>

<llo_original>
// kernel: gcn_forward.1
$region0: #{gcn_forward.1}
  #allocation0 [shape = 'u32[]', space=smem, size = 0x4, offset = 0x4, fixed_abs, tag = 'smem constant byte address 0x4 - core index']
  #allocation1 [shape = 'u32[144,128]{1,0:T(1,128)}', space=vmem, size = 0x12000, scoped, tag = 'internal scratch']
  %s0 = inlined_call_operand.hbm [shape: bf16[128,128], index: 0, kind: input, shape index: {}]
  %s1 = inlined_call_operand.hbm [shape: bf16[128,128], index: 1, kind: input, shape index: {}]
  %s2 = inlined_call_operand.hbm [shape: bf16[128,128], index: 2, kind: input, shape index: {}]
  %s3 = inlined_call_operand.hbm [shape: f32[1,128], index: 3, kind: input, shape index: {}]
  %s4 = inlined_call_operand.hbm [shape: bf16[128,128], index: 4, kind: input, shape index: {}]
  %s5 = inlined_call_operand.vmem [shape: f32[1,128], index: 5, kind: input, shape index: {}]
  %s6 = inlined_call_operand.hbm [shape: f32[128,128], index: 6, kind: output, shape index: {}]
  %s7 = sld [smem:[#allocation0]]
  $region54: #{gcn_forward.1} parent=0
    _
  %s9 = ssub.s32 1, %s7
  %s10 = scalar_select 0, %s9, %s7
  $region1: #{gcn_forward.1} parent=0
    #allocation2 [shape = 'u8[32768]{0}', space=vmem, size = 0x8000, scoped, tag = 'input window, operand 0, single buffered']
    #allocation3 [shape = 's32[1]{0}', space=sflag, size = 0x4, scoped, tag = 'scoped memory for gcn_forward.1']
    #allocation4 [shape = 's32[1]{0}', space=sflag, size = 0x4, scoped, tag = 'scoped memory for gcn_forward.1']
    #allocation5 [shape = 'u8[32768]{0}', space=vmem, size = 0x8000, scoped, tag = 'input window, operand 1, single buffered']
    #allocation6 [shape = 's32[1]{0}', space=sflag, size = 0x4, scoped, tag = 'scoped memory for gcn_forward.1']
    #allocation7 [shape = 'u8[32768]{0}', space=vmem, size = 0x8000, scoped, tag = 'input window, operand 2, single buffered']
    #allocation8 [shape = 'u8[512]{0}', space=vmem, size = 0x400, scoped, tag = 'input window, operand 3, single buffered']
    #allocation9 [shape = 's32[1]{0}', space=sflag, size = 0x4, scoped, tag = 'scoped memory for gcn_forward.1']
    #allocation10 [shape = 'u8[32768]{0}', space=vmem, size = 0x8000, scoped, tag = 'input window, operand 4, single buffered']
    #allocation11 [shape = 'u8[65536]{0}', space=vmem, size = 0x10000, scoped, tag = 'output window, operand 0, single buffered']
    %11 = vsyncpa [#allocation3], 0
    %12 = vsyncpa [#allocation6], 0
    %13 = vsyncpa [#allocation9], 0
    %14 = vsyncpa [#allocation4], 0
    // Predicated region
    $region2: #{gcn_forward.1} parent=1 // pred_check
      _
    $region3: #{gcn_forward.1} parent=1 // pred_check_branch
      %16 = sbr.rel (0) target = $region5
    $region4: #{gcn_forward.1} parent=1 // pred_region
      %s18 = ssub.s32 1024, 1024
      %19 = vsyncadd [#allocation3], %s18
      %s20 = sshll.u32 [#allocation2], 4
      %s21 = int_to_ptr.vmem [resolvable:$true] %s20
      %26 = dma.hbm_to_vmem [thread:$0]  %s0, 1024, %s21, [#allocation3], 64, 64, 4
    $region5: #{gcn_forward.1} parent=1 // pred_fallthru
      _
    // Predicated region
    $region6: #{gcn_forward.1} parent=1 // pred_check
      _
    $region7: #{gcn_forward.1} parent=1 // pred_check_branch
      %28 = sbr.rel (0) target = $region9
    $region8: #{gcn_forward.1} parent=1 // pred_region
      %s30 = ssub.s32 1024, 1024
      %31 = vsyncadd [#allocation6], %s30
      %s32 = sshll.u32 [#allocation5], 4
      %s33 = int_to_ptr.vmem [resolvable:$true] %s32
      %38 = dma.hbm_to_vmem [thread:$0]  %s1, 1024, %s33, [#allocation6], 64, 64, 4
    $region9: #{gcn_forward.1} parent=1 // pred_fallthru
      _
    // Predicated region
    $region10: #{gcn_forward.1} parent=1 // pred_check
      _
    $region11: #{gcn_forward.1} parent=1 // pred_check_branch
      %40 = sbr.rel (0) target = $region13
    $region12: #{gcn_forward.1} parent=1 // pred_region
      %s42 = ssub.s32 1024, 1024
      %43 = vsyncadd [#allocation6], %s42
      %s44 = sshll.u32 [#allocation7], 4
      %s45 = int_to_ptr.vmem [resolvable:$true] %s44
      %50 = dma.hbm_to_vmem [thread:$0]  %s2, 1024, %s45, [#allocation6], 64, 64, 4
    $region13: #{gcn_forward.1} parent=1 // pred_fallthru
      _
    // Predicated region
    $region14: #{gcn_forward.1} parent=1 // pred_check
      _
    $region15: #{gcn_forward.1} parent=1 // pred_check_branch
      %52 = sbr.rel (0) target = $region17
    $region16: #{gcn_forward.1} parent=1 // pred_region
      %s54 = ssub.s32 16, 16
      %55 = vsyncadd [#allocation9], %s54
      %s57 = sshll.u32 [#allocation8], 4
      %s58 = int_to_ptr.vmem [resolvable:$true] %s57
      %60 = dma.hbm_to_vmem [thread:$0]  %s3, 16, %s58, [#allocation9]
    $region17: #{gcn_forward.1} parent=1 // pred_fallthru
      _
    // Predicated region
    $region18: #{gcn_forward.1} parent=1 // pred_check
      _
    $region19: #{gcn_forward.1} parent=1 // pred_check_branch
      %62 = sbr.rel (0) target = $region21
    $region20: #{gcn_forward.1} parent=1 // pred_region
      %s64 = ssub.s32 1024, 1024
      %65 = vsyncadd [#allocation9], %s64
      %s66 = sshll.u32 [#allocation10], 4
      %s67 = int_to_ptr.vmem [resolvable:$true] %s66
      %72 = dma.hbm_to_vmem [thread:$0]  %s4, 1024, %s67, [#allocation9], 64, 64, 4
    $region21: #{gcn_forward.1} parent=1 // pred_fallthru
      _
    // Predicated region
    $region22: #{gcn_forward.1} parent=1 // pred_check
      _
    $region23: #{gcn_forward.1} parent=1 // pred_check_branch
      %74 = sbr.rel (0) target = $region25
    $region24: #{gcn_forward.1} parent=1 // pred_region
      _
    $region25: #{gcn_forward.1} parent=1 // pred_fallthru
      _
    // Predicated region
    $region26: #{gcn_forward.1} parent=1 // pred_check
      _
    $region27: #{gcn_forward.1} parent=1 // pred_check_branch
      %76 = sbr.rel (0) target = $region29
    $region28: #{gcn_forward.1} parent=1 // pred_region
      %77 = dma.done [#allocation3], 1024
    $region29: #{gcn_forward.1} parent=1 // pred_fallthru
      _
    // Predicated region
    $region30: #{gcn_forward.1} parent=1 // pred_check
      _
    $region31: #{gcn_forward.1} parent=1 // pred_check_branch
      %79 = sbr.rel (0) target = $region33
    $region32: #{gcn_forward.1} parent=1 // pred_region
      %80 = dma.done [#allocation6], 1024
    $region33: #{gcn_forward.1} parent=1 // pred_fallthru
      _
    // Predicated region
    $region34: #{gcn_forward.1} parent=1 // pred_check
      _
    $region35: #{gcn_forward.1} parent=1 // pred_check_branch
      %82 = sbr.rel (0) target = $region37
    $region36: #{gcn_forward.1} parent=1 // pred_region
      %83 = dma.done [#allocation6], 1024
    $region37: #{gcn_forward.1} parent=1 // pred_fallthru
      _
    // Predicated region
    $region38: #{gcn_forward.1} parent=1 // pred_check
      _
    $region39: #{gcn_forward.1} parent=1 // pred_check_branch
      %85 = sbr.rel (0) target = $region41
    $region40: #{gcn_forward.1} parent=1 // pred_region
      %86 = dma.done [#allocation9], 16
    $region41: #{gcn_forward.1} parent=1 // pred_fallthru
      _
    // Predicated region
    $region42: #{gcn_forward.1} parent=1 // pred_check
      _
    $region43: #{gcn_forward.1} parent=1 // pred_check_branch
      %88 = sbr.rel (0) target = $region45
    $region44: #{gcn_forward.1} parent=1 // pred_region
      %89 = dma.done [#allocation9], 1024
    $region45: #{gcn_forward.1} parent=1 // pred_fallthru
      _
    %v91 = vld [vmem:[#allocation2] sm:$0xf]
    %v92 = vld [vmem:[#allocation2 + $0x4] sm:$0xf]
    %v93 = vld [vmem:[#allocation2 + $0x8] sm:$0xf]
    %v94 = vld [vmem:[#allocation2 + $0xc] sm:$0xf]
    %v95 = vld [vmem:[#allocation2 + $0x10] sm:$0xf]
    %v96 = vld [vmem:[#allocation2 + $0x14] sm:$0xf]
    %v97 = vld [vmem:[#allocation2 + $0x18] sm:$0xf]
    %v98 = vld [vmem:[#allocation2 + $0x1c] sm:$0xf]
    %v99 = vld [vmem:[#allocation2 + $0x20] sm:$0xf]
    %v100 = vld [vmem:[#allocation2 + $0x24] sm:$0xf]
    %v101 = vld [vmem:[#allocation2 + $0x28] sm:$0xf]
    %v102 = vld [vmem:[#allocation2 + $0x2c] sm:$0xf]
    %v103 = vld [vmem:[#allocation2 + $0x30] sm:$0xf]
    %v104 = vld [vmem:[#allocation2 + $0x34] sm:$0xf]
    %v105 = vld [vmem:[#allocation2 + $0x38] sm:$0xf]
    %v106 = vld [vmem:[#allocation2 + $0x3c] sm:$0xf]
    %v107 = vld [vmem:[#allocation5] sm:$0xf]
    %v108 = vld [vmem:[#allocation5 + $0x4] sm:$0xf]
    %v109 = vld [vmem:[#allocation5 + $0x8] sm:$0xf]
    %v110 = vld [vmem:[#allocation5 + $0xc] sm:$0xf]
    %v111 = vld [vmem:[#allocation5 + $0x10] sm:$0xf]
    %v112 = vld [vmem:[#allocation5 + $0x14] sm:$0xf]
    %v113 = vld [vmem:[#allocation5 + $0x18] sm:$0xf]
    %v114 = vld [vmem:[#allocation5 + $0x1c] sm:$0xf]
    %v115 = vld [vmem:[#allocation5 + $0x20] sm:$0xf]
    %v116 = vld [vmem:[#allocation5 + $0x24] sm:$0xf]
    %v117 = vld [vmem:[#allocation5 + $0x28] sm:$0xf]
    %v118 = vld [vmem:[#allocation5 + $0x2c] sm:$0xf]
    %v119 = vld [vmem:[#allocation5 + $0x30] sm:$0xf]
    %v120 = vld [vmem:[#allocation5 + $0x34] sm:$0xf]
    %v121 = vld [vmem:[#allocation5 + $0x38] sm:$0xf]
    %v122 = vld [vmem:[#allocation5 + $0x3c] sm:$0xf]
    %v123 = vld [vmem:[#allocation7] sm:$0xf]
    %v124 = vld [vmem:[#allocation7 + $0x4] sm:$0xf]
    %v125 = vld [vmem:[#allocation7 + $0x8] sm:$0xf]
    %v126 = vld [vmem:[#allocation7 + $0xc] sm:$0xf]
    %v127 = vld [vmem:[#allocation7 + $0x10] sm:$0xf]
    %v128 = vld [vmem:[#allocation7 + $0x14] sm:$0xf]
    %v129 = vld [vmem:[#allocation7 + $0x18] sm:$0xf]
    %v130 = vld [vmem:[#allocation7 + $0x1c] sm:$0xf]
    %v131 = vld [vmem:[#allocation7 + $0x20] sm:$0xf]
    %v132 = vld [vmem:[#allocation7 + $0x24] sm:$0xf]
    %v133 = vld [vmem:[#allocation7 + $0x28] sm:$0xf]
    %v134 = vld [vmem:[#allocation7 + $0x2c] sm:$0xf]
    %v135 = vld [vmem:[#allocation7 + $0x30] sm:$0xf]
    %v136 = vld [vmem:[#allocation7 + $0x34] sm:$0xf]
    %v137 = vld [vmem:[#allocation7 + $0x38] sm:$0xf]
    %v138 = vld [vmem:[#allocation7 + $0x3c] sm:$0xf]
    %v155 = vunpack.c.l.b16 %v107
    %v156 = vunpack.c.l.b16 %v108
    %v157 = vunpack.c.l.b16 %v109
    %v158 = vunpack.c.l.b16 %v110
    %v159 = vunpack.c.l.b16 %v111
    %v160 = vunpack.c.l.b16 %v112
    %v161 = vunpack.c.l.b16 %v113
    %v162 = vunpack.c.l.b16 %v114
    %v163 = vunpack.c.l.b16 %v115
    %v164 = vunpack.c.l.b16 %v116
    %v165 = vunpack.c.l.b16 %v117
    %v166 = vunpack.c.l.b16 %v118
    %v167 = vunpack.c.l.b16 %v119
    %v168 = vunpack.c.l.b16 %v120
    %v169 = vunpack.c.l.b16 %v121
    %v170 = vunpack.c.l.b16 %v122
    %v171 = vpack.c.b16 %v156, %v155
    %v172 = vpack.c.b16 %v158, %v157
    %v173 = vpack.c.b16 %v160, %v159
    %v174 = vpack.c.b16 %v162, %v161
    %v175 = vpack.c.b16 %v164, %v163
    %v176 = vpack.c.b16 %v166, %v165
    %v177 = vpack.c.b16 %v168, %v167
    %v178 = vpack.c.b16 %v170, %v169
    %v203 = vunpack.c.l.b16 %v123
    %v204 = vunpack.c.l.b16 %v124
    %v205 = vunpack.c.l.b16 %v125
    %v206 = vunpack.c.l.b16 %v126
    %v207 = vunpack.c.l.b16 %v127
    %v208 = vunpack.c.l.b16 %v128
    %v209 = vunpack.c.l.b16 %v129
    %v210 = vunpack.c.l.b16 %v130
    %v211 = vunpack.c.l.b16 %v131
    %v212 = vunpack.c.l.b16 %v132
    %v213 = vunpack.c.l.b16 %v133
    %v214 = vunpack.c.l.b16 %v134
    %v215 = vunpack.c.l.b16 %v135
    %v216 = vunpack.c.l.b16 %v136
    %v217 = vunpack.c.l.b16 %v137
    %v218 = vunpack.c.l.b16 %v138
    %v219 = vpack.c.b16 %v204, %v203
    %v220 = vpack.c.b16 %v206, %v205
    %v221 = vpack.c.b16 %v208, %v207
    %v222 = vpack.c.b16 %v210, %v209
    %v223 = vpack.c.b16 %v212, %v211
    %v224 = vpack.c.b16 %v214, %v213
    %v225 = vpack.c.b16 %v216, %v215
    %v226 = vpack.c.b16 %v218, %v217
    %235 = vmatprep.subr.bf16.mxu0 0
    %236 = vmatpush1.bf16.msra.mxu0 %v219
    %237 = vmatprep.subr.bf16.mxu0 0
    %238 = vmatpush1.bf16.msra.mxu0 %v220
    %239 = vmatprep.subr.bf16.mxu0 0
    %240 = vmatpush1.bf16.msra.mxu0 %v221
    %241 = vmatprep.subr.bf16.mxu0 0
    %242 = vmatpush1.bf16.msra.mxu0 %v222
    %243 = vmatprep.subr.bf16.mxu0 0
    %244 = vmatpush1.bf16.msra.mxu0 %v223
    %245 = vmatprep.subr.bf16.mxu0 0
    %246 = vmatpush1.bf16.msra.mxu0 %v224
    %247 = vmatprep.subr.bf16.mxu0 0
    %248 = vmatpush1.bf16.msra.mxu0 %v225
    %249 = vmatprep.subr.bf16.mxu0 0
    %250 = vmatpush1.bf16.msra.mxu0 %v226
    %251 = vmatprep.subr.bf16.mxu0 0
    %252 = vmatpush1.bf16.msra.mxu0 0
    %253 = vmatprep.subr.bf16.mxu0 0
    %254 = vmatpush1.bf16.msra.mxu0 0
    %255 = vmatprep.subr.bf16.mxu0 0
    %256 = vmatpush1.bf16.msra.mxu0 0
    %257 = vmatprep.subr.bf16.mxu0 0
    %258 = vmatpush1.bf16.msra.mxu0 0
    %259 = vmatprep.subr.bf16.mxu0 0
    %260 = vmatpush1.bf16.msra.mxu0 0
    %261 = vmatprep.subr.bf16.mxu0 0
    %262 = vmatpush1.bf16.msra.mxu0 0
    %263 = vmatprep.subr.bf16.mxu0 0
    %264 = vmatpush1.bf16.msra.mxu0 0
    %265 = vmatprep.subr.bf16.mxu0 0
    %266 = vmatpush1.bf16.msra.mxu0 0
    %267 = vmatprep.mubr.bf16.mxu0 0
    %268 = vmatmul.mubr.bf16.gmra.mrb[0].mxu0 %v171
    %v269 = vpop.f32.mrb[0].mxu0
    %v270 = vadd.f32 0.0, %v269
    %v271 = vpop.f32.mrb[0].mxu0
    %v272 = vpop.f32.mrb[0].mxu0
    %v273 = vadd.f32 0.0, %v272
    %v274 = vpop.f32.mrb[0].mxu0
    %275 = vmatprep.mubr.bf16.mxu0 0
    %276 = vmatmul.mubr.bf16.gmra.mrb[0].mxu0 %v172
    %v277 = vpop.f32.mrb[0].mxu0
    %v278 = vadd.f32 0.0, %v277
    %v279 = vpop.f32.mrb[0].mxu0
    %v280 = vpop.f32.mrb[0].mxu0
    %v281 = vadd.f32 0.0, %v280
    %v282 = vpop.f32.mrb[0].mxu0
    %283 = vmatprep.mubr.bf16.mxu0 0
    %284 = vmatmul.mubr.bf16.gmra.mrb[0].mxu0 %v173
    %v285 = vpop.f32.mrb[0].mxu0
    %v286 = vadd.f32 0.0, %v285
    %v287 = vpop.f32.mrb[0].mxu0
    %v288 = vpop.f32.mrb[0].mxu0
    %v289 = vadd.f32 0.0, %v288
    %v290 = vpop.f32.mrb[0].mxu0
    %291 = vmatprep.mubr.bf16.mxu0 0
    %292 = vmatmul.mubr.bf16.gmra.mrb[0].mxu0 %v174
    %v293 = vpop.f32.mrb[0].mxu0
    %v294 = vadd.f32 0.0, %v293
    %v295 = vpop.f32.mrb[0].mxu0
    %v296 = vpop.f32.mrb[0].mxu0
    %v297 = vadd.f32 0.0, %v296
    %v298 = vpop.f32.mrb[0].mxu0
    %299 = vmatprep.mubr.bf16.mxu0 0
    %300 = vmatmul.mubr.bf16.gmra.mrb[0].mxu0 %v175
    %v301 = vpop.f32.mrb[0].mxu0
    %v302 = vadd.f32 0.0, %v301
    %v303 = vpop.f32.mrb[0].mxu0
    %v304 = vpop.f32.mrb[0].mxu0
    %v305 = vadd.f32 0.0, %v304
    %v306 = vpop.f32.mrb[0].mxu0
    %307 = vmatprep.mubr.bf16.mxu0 0
    %308 = vmatmul.mubr.bf16.gmra.mrb[0].mxu0 %v176
    %v309 = vpop.f32.mrb[0].mxu0
    %v310 = vadd.f32 0.0, %v309
    %v311 = vpop.f32.mrb[0].mxu0
    %v312 = vpop.f32.mrb[0].mxu0
    %v313 = vadd.f32 0.0, %v312
    %v314 = vpop.f32.mrb[0].mxu0
    %315 = vmatprep.mubr.bf16.mxu0 0
    %316 = vmatmul.mubr.bf16.gmra.mrb[0].mxu0 %v177
    %v317 = vpop.f32.mrb[0].mxu0
    %v318 = vadd.f32 0.0, %v317
    %v319 = vpop.f32.mrb[0].mxu0
    %v320 = vpop.f32.mrb[0].mxu0
    %v321 = vadd.f32 0.0, %v320
    %v322 = vpop.f32.mrb[0].mxu0
    %323 = vmatprep.mubr.bf16.mxu0 0
    %324 = vmatmul.mubr.bf16.gmra.mrb[0].mxu0 %v178
    %v325 = vpop.f32.mrb[0].mxu0
    %v326 = vadd.f32 0.0, %v325
    %v327 = vpop.f32.mrb[0].mxu0
    %v328 = vpop.f32.mrb[0].mxu0
    %v329 = vadd.f32 0.0, %v328
    %v330 = vpop.f32.mrb[0].mxu0
    %331 = vdwg.mxu0
    %v332 = vpack.c.bf16 %v273, %v270
    %v333 = vpack.c.bf16 %v281, %v278
    %v334 = vpack.c.bf16 %v289, %v286
    %v335 = vpack.c.bf16 %v297, %v294
    %v336 = vpack.c.bf16 %v305, %v302
    %v337 = vpack.c.bf16 %v313, %v310
    %v338 = vpack.c.bf16 %v321, %v318
    %v339 = vpack.c.bf16 %v329, %v326
    %v340 = vld [vmem:[#allocation8] sm:$0x1]
    %v342 = vlaneseq
    %v343 = vshrl.u32 %v342, 7
    %v344 = vsub.s32 0, %v343
    %v345 = vrot.slane %v340, %v344
    %v363 = vunpack.c.l.b16 %v91
    %v364 = vunpack.c.l.b16 %v92
    %v365 = vunpack.c.l.b16 %v93
    %v366 = vunpack.c.l.b16 %v94
    %v367 = vunpack.c.l.b16 %v95
    %v368 = vunpack.c.l.b16 %v96
    %v369 = vunpack.c.l.b16 %v97
    %v370 = vunpack.c.l.b16 %v98
    %v371 = vunpack.c.l.b16 %v99
    %v372 = vunpack.c.l.b16 %v100
    %v373 = vunpack.c.l.b16 %v101
    %v374 = vunpack.c.l.b16 %v102
    %v375 = vunpack.c.l.b16 %v103
    %v376 = vunpack.c.l.b16 %v104
    %v377 = vunpack.c.l.b16 %v105
    %v378 = vunpack.c.l.b16 %v106
    %v379 = vpack.c.b16 %v364, %v363
    %v380 = vpack.c.b16 %v366, %v365
    %v381 = vpack.c.b16 %v368, %v367
    %v382 = vpack.c.b16 %v370, %v369
    %v383 = vpack.c.b16 %v372, %v371
    %v384 = vpack.c.b16 %v374, %v373
    %v385 = vpack.c.b16 %v376, %v375
    %v386 = vpack.c.b16 %v378, %v377
    %395 = vmatprep.subr.bf16.mxu0 0
    %396 = vmatpush1.bf16.msra.mxu0 %v332
    %397 = vmatprep.subr.bf16.mxu0 0
    %398 = vmatpush1.bf16.msra.mxu0 %v333
    %399 = vmatprep.subr.bf16.mxu0 0
    %400 = vmatpush1.bf16.msra.mxu0 %v334
    %401 = vmatprep.subr.bf16.mxu0 0
    %402 = vmatpush1.bf16.msra.mxu0 %v335
    %403 = vmatprep.subr.bf16.mxu0 0
    %404 = vmatpush1.bf16.msra.mxu0 %v336
    %405 = vmatprep.subr.bf16.mxu0 0
    %406 = vmatpush1.bf16.msra.mxu0 %v337
    %407 = vmatprep.subr.bf16.mxu0 0
    %408 = vmatpush1.bf16.msra.mxu0 %v338
    %409 = vmatprep.subr.bf16.mxu0 0
    %410 = vmatpush1.bf16.msra.mxu0 %v339
    %411 = vmatprep.subr.bf16.mxu0 0
    %412 = vmatpush1.bf16.msra.mxu0 0
    %413 = vmatprep.subr.bf16.mxu0 0
    %414 = vmatpush1.bf16.msra.mxu0 0
    %415 = vmatprep.subr.bf16.mxu0 0
    %416 = vmatpush1.bf16.msra.mxu0 0
    %417 = vmatprep.subr.bf16.mxu0 0
    %418 = vmatpush1.bf16.msra.mxu0 0
    %419 = vmatprep.subr.bf16.mxu0 0
    %420 = vmatpush1.bf16.msra.mxu0 0
    %421 = vmatprep.subr.bf16.mxu0 0
    %422 = vmatpush1.bf16.msra.mxu0 0
    %423 = vmatprep.subr.bf16.mxu0 0
    %424 = vmatpush1.bf16.msra.mxu0 0
    %425 = vmatprep.subr.bf16.mxu0 0
    %426 = vmatpush1.bf16.msra.mxu0 0
    %427 = vmatprep.mubr.bf16.mxu0 0
    %428 = vmatmul.mubr.bf16.gmra.mrb[0].mxu0 %v379
    %v429 = vpop.f32.mrb[0].mxu0
    %v430 = vadd.f32 %v345, %v429
    %v431 = vpop.f32.mrb[0].mxu0
    %v432 = vpop.f32.mrb[0].mxu0
    %v433 = vadd.f32 %v345, %v432
    %v434 = vpop.f32.mrb[0].mxu0
    %435 = vmatprep.mubr.bf16.mxu0 0
    %436 = vmatmul.mubr.bf16.gmra.mrb[0].mxu0 %v380
    %v437 = vpop.f32.mrb[0].mxu0
    %v438 = vadd.f32 %v345, %v437
    %v439 = vpop.f32.mrb[0].mxu0
    %v440 = vpop.f32.mrb[0].mxu0
    %v441 = vadd.f32 %v345, %v440
    %v442 = vpop.f32.mrb[0].mxu0
    %443 = vmatprep.mubr.bf16.mxu0 0
    %444 = vmatmul.mubr.bf16.gmra.mrb[0].mxu0 %v381
    %v445 = vpop.f32.mrb[0].mxu0
    %v446 = vadd.f32 %v345, %v445
    %v447 = vpop.f32.mrb[0].mxu0
    %v448 = vpop.f32.mrb[0].mxu0
    %v449 = vadd.f32 %v345, %v448
    %v450 = vpop.f32.mrb[0].mxu0
    %451 = vmatprep.mubr.bf16.mxu0 0
    %452 = vmatmul.mubr.bf16.gmra.mrb[0].mxu0 %v382
    %v453 = vpop.f32.mrb[0].mxu0
    %v454 = vadd.f32 %v345, %v453
    %v455 = vpop.f32.mrb[0].mxu0
    %v456 = vpop.f32.mrb[0].mxu0
    %v457 = vadd.f32 %v345, %v456
    %v458 = vpop.f32.mrb[0].mxu0
    %459 = vmatprep.mubr.bf16.mxu0 0
    %460 = vmatmul.mubr.bf16.gmra.mrb[0].mxu0 %v383
    %v461 = vpop.f32.mrb[0].mxu0
    %v462 = vadd.f32 %v345, %v461
    %v463 = vpop.f32.mrb[0].mxu0
    %v464 = vpop.f32.mrb[0].mxu0
    %v465 = vadd.f32 %v345, %v464
    %v466 = vpop.f32.mrb[0].mxu0
    %467 = vmatprep.mubr.bf16.mxu0 0
    %468 = vmatmul.mubr.bf16.gmra.mrb[0].mxu0 %v384
    %v469 = vpop.f32.mrb[0].mxu0
    %v470 = vadd.f32 %v345, %v469
    %v471 = vpop.f32.mrb[0].mxu0
    %v472 = vpop.f32.mrb[0].mxu0
    %v473 = vadd.f32 %v345, %v472
    %v474 = vpop.f32.mrb[0].mxu0
    %475 = vmatprep.mubr.bf16.mxu0 0
    %476 = vmatmul.mubr.bf16.gmra.mrb[0].mxu0 %v385
    %v477 = vpop.f32.mrb[0].mxu0
    %v478 = vadd.f32 %v345, %v477
    %v479 = vpop.f32.mrb[0].mxu0
    %v480 = vpop.f32.mrb[0].mxu0
    %v481 = vadd.f32 %v345, %v480
    %v482 = vpop.f32.mrb[0].mxu0
    %483 = vmatprep.mubr.bf16.mxu0 0
    %484 = vmatmul.mubr.bf16.gmra.mrb[0].mxu0 %v386
    %v485 = vpop.f32.mrb[0].mxu0
    %v486 = vadd.f32 %v345, %v485
    %v487 = vpop.f32.mrb[0].mxu0
    %v488 = vpop.f32.mrb[0].mxu0
    %v489 = vadd.f32 %v345, %v488
    %v490 = vpop.f32.mrb[0].mxu0
    %491 = vdwg.mxu0
    %v492 = vmax.f32 %v430, 0.0
    %v493 = vmax.f32 %v433, 0.0
    %v494 = vmax.f32 %v438, 0.0
    %v495 = vmax.f32 %v441, 0.0
    %v496 = vmax.f32 %v446, 0.0
    %v497 = vmax.f32 %v449, 0.0
    %v498 = vmax.f32 %v454, 0.0
    %v499 = vmax.f32 %v457, 0.0
    %v500 = vmax.f32 %v462, 0.0
    %v501 = vmax.f32 %v465, 0.0
    %v502 = vmax.f32 %v470, 0.0
    %v503 = vmax.f32 %v473, 0.0
    %v504 = vmax.f32 %v478, 0.0
    %v505 = vmax.f32 %v481, 0.0
    %v506 = vmax.f32 %v486, 0.0
    %v507 = vmax.f32 %v489, 0.0
    %v508 = vpack.c.bf16 %v493, %v492
    %v509 = vpack.c.bf16 %v495, %v494
    %v510 = vpack.c.bf16 %v497, %v496
    %v511 = vpack.c.bf16 %v499, %v498
    %v512 = vpack.c.bf16 %v501, %v500
    %v513 = vpack.c.bf16 %v503, %v502
    %v514 = vpack.c.bf16 %v505, %v504
    %v515 = vpack.c.bf16 %v507, %v506
    %v516 = vld [vmem:[#allocation10] sm:$0xf]
    %v517 = vld [vmem:[#allocation10 + $0x4] sm:$0xf]
    %v518 = vld [vmem:[#allocation10 + $0x8] sm:$0xf]
    %v519 = vld [vmem:[#allocation10 + $0xc] sm:$0xf]
    %v520 = vld [vmem:[#allocation10 + $0x10] sm:$0xf]
    %v521 = vld [vmem:[#allocation10 + $0x14] sm:$0xf]
    %v522 = vld [vmem:[#allocation10 + $0x18] sm:$0xf]
    %v523 = vld [vmem:[#allocation10 + $0x1c] sm:$0xf]
    %v524 = vld [vmem:[#allocation10 + $0x20] sm:$0xf]
    %v525 = vld [vmem:[#allocation10 + $0x24] sm:$0xf]
    %v526 = vld [vmem:[#allocation10 + $0x28] sm:$0xf]
    %v527 = vld [vmem:[#allocation10 + $0x2c] sm:$0xf]
    %v528 = vld [vmem:[#allocation10 + $0x30] sm:$0xf]
    %v529 = vld [vmem:[#allocation10 + $0x34] sm:$0xf]
    %v530 = vld [vmem:[#allocation10 + $0x38] sm:$0xf]
    %v531 = vld [vmem:[#allocation10 + $0x3c] sm:$0xf]
    %v548 = vunpack.c.l.b16 %v516
    %v549 = vunpack.c.l.b16 %v517
    %v550 = vunpack.c.l.b16 %v518
    %v551 = vunpack.c.l.b16 %v519
    %v552 = vunpack.c.l.b16 %v520
    %v553 = vunpack.c.l.b16 %v521
    %v554 = vunpack.c.l.b16 %v522
    %v555 = vunpack.c.l.b16 %v523
    %v556 = vunpack.c.l.b16 %v524
    %v557 = vunpack.c.l.b16 %v525
    %v558 = vunpack.c.l.b16 %v526
    %v559 = vunpack.c.l.b16 %v527
    %v560 = vunpack.c.l.b16 %v528
    %v561 = vunpack.c.l.b16 %v529
    %v562 = vunpack.c.l.b16 %v530
    %v563 = vunpack.c.l.b16 %v531
    %v564 = vpack.c.b16 %v549, %v548
    %v565 = vpack.c.b16 %v551, %v550
    %v566 = vpack.c.b16 %v553, %v552
    %v567 = vpack.c.b16 %v555, %v554
    %v568 = vpack.c.b16 %v557, %v556
    %v569 = vpack.c.b16 %v559, %v558
    %v570 = vpack.c.b16 %v561, %v560
    %v571 = vpack.c.b16 %v563, %v562
    %580 = vmatprep.subr.bf16.mxu0 0
    %581 = vmatpush1.bf16.msra.mxu0 %v564
    %582 = vmatprep.subr.bf16.mxu0 0
    %583 = vmatpush1.bf16.msra.mxu0 %v565
    %584 = vmatprep.subr.bf16.mxu0 0
    %585 = vmatpush1.bf16.msra.mxu0 %v566
    %586 = vmatprep.subr.bf16.mxu0 0
    %587 = vmatpush1.bf16.msra.mxu0 %v567
    %588 = vmatprep.subr.bf16.mxu0 0
    %589 = vmatpush1.bf16.msra.mxu0 %v568
    %590 = vmatprep.subr.bf16.mxu0 0
    %591 = vmatpush1.bf16.msra.mxu0 %v569
    %592 = vmatprep.subr.bf16.mxu0 0
    %593 = vmatpush1.bf16.msra.mxu0 %v570
    %594 = vmatprep.subr.bf16.mxu0 0
    %595 = vmatpush1.bf16.msra.mxu0 %v571
    %596 = vmatprep.subr.bf16.mxu0 0
    %597 = vmatpush1.bf16.msra.mxu0 0
    %598 = vmatprep.subr.bf16.mxu0 0
    %599 = vmatpush1.bf16.msra.mxu0 0
    %600 = vmatprep.subr.bf16.mxu0 0
    %601 = vmatpush1.bf16.msra.mxu0 0
    %602 = vmatprep.subr.bf16.mxu0 0
    %603 = vmatpush1.bf16.msra.mxu0 0
    %604 = vmatprep.subr.bf16.mxu0 0
    %605 = vmatpush1.bf16.msra.mxu0 0
    %606 = vmatprep.subr.bf16.mxu0 0
    %607 = vmatpush1.bf16.msra.mxu0 0
    %608 = vmatprep.subr.bf16.mxu0 0
    %609 = vmatpush1.bf16.msra.mxu0 0
    %610 = vmatprep.subr.bf16.mxu0 0
    %611 = vmatpush1.bf16.msra.mxu0 0
    %612 = vmatprep.mubr.bf16.mxu0 0
    %613 = vmatmul.mubr.bf16.gmra.mrb[0].mxu0 %v508
    %v614 = vpop.f32.mrb[0].mxu0
    %v615 = vadd.f32 0.0, %v614
    %v616 = vpop.f32.mrb[0].mxu0
    %v617 = vpop.f32.mrb[0].mxu0
    %v618 = vadd.f32 0.0, %v617
    %v619 = vpop.f32.mrb[0].mxu0
    %620 = vmatprep.mubr.bf16.mxu0 0
    %621 = vmatmul.mubr.bf16.gmra.mrb[0].mxu0 %v509
    %v622 = vpop.f32.mrb[0].mxu0
    %v623 = vadd.f32 0.0, %v622
    %v624 = vpop.f32.mrb[0].mxu0
    %v625 = vpop.f32.mrb[0].mxu0
    %v626 = vadd.f32 0.0, %v625
    %v627 = vpop.f32.mrb[0].mxu0
    %628 = vmatprep.mubr.bf16.mxu0 0
    %629 = vmatmul.mubr.bf16.gmra.mrb[0].mxu0 %v510
    %v630 = vpop.f32.mrb[0].mxu0
    %v631 = vadd.f32 0.0, %v630
    %v632 = vpop.f32.mrb[0].mxu0
    %v633 = vpop.f32.mrb[0].mxu0
    %v634 = vadd.f32 0.0, %v633
    %v635 = vpop.f32.mrb[0].mxu0
    %636 = vmatprep.mubr.bf16.mxu0 0
    %637 = vmatmul.mubr.bf16.gmra.mrb[0].mxu0 %v511
    %v638 = vpop.f32.mrb[0].mxu0
    %v639 = vadd.f32 0.0, %v638
    %v640 = vpop.f32.mrb[0].mxu0
    %v641 = vpop.f32.mrb[0].mxu0
    %v642 = vadd.f32 0.0, %v641
    %v643 = vpop.f32.mrb[0].mxu0
    %644 = vmatprep.mubr.bf16.mxu0 0
    %645 = vmatmul.mubr.bf16.gmra.mrb[0].mxu0 %v512
    %v646 = vpop.f32.mrb[0].mxu0
    %v647 = vadd.f32 0.0, %v646
    %v648 = vpop.f32.mrb[0].mxu0
    %v649 = vpop.f32.mrb[0].mxu0
    %v650 = vadd.f32 0.0, %v649
    %v651 = vpop.f32.mrb[0].mxu0
    %652 = vmatprep.mubr.bf16.mxu0 0
    %653 = vmatmul.mubr.bf16.gmra.mrb[0].mxu0 %v513
    %v654 = vpop.f32.mrb[0].mxu0
    %v655 = vadd.f32 0.0, %v654
    %v656 = vpop.f32.mrb[0].mxu0
    %v657 = vpop.f32.mrb[0].mxu0
    %v658 = vadd.f32 0.0, %v657
    %v659 = vpop.f32.mrb[0].mxu0
    %660 = vmatprep.mubr.bf16.mxu0 0
    %661 = vmatmul.mubr.bf16.gmra.mrb[0].mxu0 %v514
    %v662 = vpop.f32.mrb[0].mxu0
    %v663 = vadd.f32 0.0, %v662
    %v664 = vpop.f32.mrb[0].mxu0
    %v665 = vpop.f32.mrb[0].mxu0
    %v666 = vadd.f32 0.0, %v665
    %v667 = vpop.f32.mrb[0].mxu0
    %668 = vmatprep.mubr.bf16.mxu0 0
    %669 = vmatmul.mubr.bf16.gmra.mrb[0].mxu0 %v515
    %v670 = vpop.f32.mrb[0].mxu0
    %v671 = vadd.f32 0.0, %v670
    %v672 = vpop.f32.mrb[0].mxu0
    %v673 = vpop.f32.mrb[0].mxu0
    %v674 = vadd.f32 0.0, %v673
    %v675 = vpop.f32.mrb[0].mxu0
    %676 = vdwg.mxu0
    %v677 = vpack.c.bf16 %v618, %v615
    %v678 = vpack.c.bf16 %v626, %v623
    %v679 = vpack.c.bf16 %v634, %v631
    %v680 = vpack.c.bf16 %v642, %v639
    %v681 = vpack.c.bf16 %v650, %v647
    %v682 = vpack.c.bf16 %v658, %v655
    %v683 = vpack.c.bf16 %v666, %v663
    %v684 = vpack.c.bf16 %v674, %v671
    %v685 = vld [vmem:[%s5] sm:$0x1]
    %v687 = vlaneseq
    %v688 = vshrl.u32 %v687, 7
    %v689 = vsub.s32 0, %v688
    %v690 = vrot.slane %v685, %v689
    %692 = vmatprep.subr.bf16.mxu0 0
    %693 = vmatpush1.bf16.msra.mxu0 %v677
    %694 = vmatprep.subr.bf16.mxu0 0
    %695 = vmatpush1.bf16.msra.mxu0 %v678
    %696 = vmatprep.subr.bf16.mxu0 0
    %697 = vmatpush1.bf16.msra.mxu0 %v679
    %698 = vmatprep.subr.bf16.mxu0 0
    %699 = vmatpush1.bf16.msra.mxu0 %v680
    %700 = vmatprep.subr.bf16.mxu0 0
    %701 = vmatpush1.bf16.msra.mxu0 %v681
    %702 = vmatprep.subr.bf16.mxu0 0
    %703 = vmatpush1.bf16.msra.mxu0 %v682
    %704 = vmatprep.subr.bf16.mxu0 0
    %705 = vmatpush1.bf16.msra.mxu0 %v683
    %706 = vmatprep.subr.bf16.mxu0 0
    %707 = vmatpush1.bf16.msra.mxu0 %v684
    %708 = vmatprep.subr.bf16.mxu0 0
    %709 = vmatpush1.bf16.msra.mxu0 0
    %710 = vmatprep.subr.bf16.mxu0 0
    %711 = vmatpush1.bf16.msra.mxu0 0
    %712 = vmatprep.subr.bf16.mxu0 0
    %713 = vmatpush1.bf16.msra.mxu0 0
    %714 = vmatprep.subr.bf16.mxu0 0
    %715 = vmatpush1.bf16.msra.mxu0 0
    %716 = vmatprep.subr.bf16.mxu0 0
    %717 = vmatpush1.bf16.msra.mxu0 0
    %718 = vmatprep.subr.bf16.mxu0 0
    %719 = vmatpush1.bf16.msra.mxu0 0
    %720 = vmatprep.subr.bf16.mxu0 0
    %721 = vmatpush1.bf16.msra.mxu0 0
    %722 = vmatprep.subr.bf16.mxu0 0
    %723 = vmatpush1.bf16.msra.mxu0 0
    %724 = vmatprep.mubr.bf16.mxu0 0
    %725 = vmatmul.mubr.bf16.gmra.mrb[0].mxu0 %v379
    %v726 = vpop.f32.mrb[0].mxu0
    %v727 = vadd.f32 %v690, %v726
    %v728 = vpop.f32.mrb[0].mxu0
    %v729 = vpop.f32.mrb[0].mxu0
    %v730 = vadd.f32 %v690, %v729
    %v731 = vpop.f32.mrb[0].mxu0
    %732 = vmatprep.mubr.bf16.mxu0 0
    %733 = vmatmul.mubr.bf16.gmra.mrb[0].mxu0 %v380
    %v734 = vpop.f32.mrb[0].mxu0
    %v735 = vadd.f32 %v690, %v734
    %v736 = vpop.f32.mrb[0].mxu0
    %v737 = vpop.f32.mrb[0].mxu0
    %v738 = vadd.f32 %v690, %v737
    %v739 = vpop.f32.mrb[0].mxu0
    %740 = vmatprep.mubr.bf16.mxu0 0
    %741 = vmatmul.mubr.bf16.gmra.mrb[0].mxu0 %v381
    %v742 = vpop.f32.mrb[0].mxu0
    %v743 = vadd.f32 %v690, %v742
    %v744 = vpop.f32.mrb[0].mxu0
    %v745 = vpop.f32.mrb[0].mxu0
    %v746 = vadd.f32 %v690, %v745
    %v747 = vpop.f32.mrb[0].mxu0
    %748 = vmatprep.mubr.bf16.mxu0 0
    %749 = vmatmul.mubr.bf16.gmra.mrb[0].mxu0 %v382
    %v750 = vpop.f32.mrb[0].mxu0
    %v751 = vadd.f32 %v690, %v750
    %v752 = vpop.f32.mrb[0].mxu0
    %v753 = vpop.f32.mrb[0].mxu0
    %v754 = vadd.f32 %v690, %v753
    %v755 = vpop.f32.mrb[0].mxu0
    %756 = vmatprep.mubr.bf16.mxu0 0
    %757 = vmatmul.mubr.bf16.gmra.mrb[0].mxu0 %v383
    %v758 = vpop.f32.mrb[0].mxu0
    %v759 = vadd.f32 %v690, %v758
    %v760 = vpop.f32.mrb[0].mxu0
    %v761 = vpop.f32.mrb[0].mxu0
    %v762 = vadd.f32 %v690, %v761
    %v763 = vpop.f32.mrb[0].mxu0
    %764 = vmatprep.mubr.bf16.mxu0 0
    %765 = vmatmul.mubr.bf16.gmra.mrb[0].mxu0 %v384
    %v766 = vpop.f32.mrb[0].mxu0
    %v767 = vadd.f32 %v690, %v766
    %v768 = vpop.f32.mrb[0].mxu0
    %v769 = vpop.f32.mrb[0].mxu0
    %v770 = vadd.f32 %v690, %v769
    %v771 = vpop.f32.mrb[0].mxu0
    %772 = vmatprep.mubr.bf16.mxu0 0
    %773 = vmatmul.mubr.bf16.gmra.mrb[0].mxu0 %v385
    %v774 = vpop.f32.mrb[0].mxu0
    %v775 = vadd.f32 %v690, %v774
    %v776 = vpop.f32.mrb[0].mxu0
    %v777 = vpop.f32.mrb[0].mxu0
    %v778 = vadd.f32 %v690, %v777
    %v779 = vpop.f32.mrb[0].mxu0
    %780 = vmatprep.mubr.bf16.mxu0 0
    %781 = vmatmul.mubr.bf16.gmra.mrb[0].mxu0 %v386
    %v782 = vpop.f32.mrb[0].mxu0
    %v783 = vadd.f32 %v690, %v782
    %v784 = vpop.f32.mrb[0].mxu0
    %v785 = vpop.f32.mrb[0].mxu0
    %v786 = vadd.f32 %v690, %v785
    %v787 = vpop.f32.mrb[0].mxu0
    %788 = vdwg.mxu0
    %789 = vst [vmem:[#allocation11] sm:$0xff] %v727
    %790 = vst [vmem:[#allocation11 + $0x8] sm:$0xff] %v730
    %791 = vst [vmem:[#allocation11 + $0x10] sm:$0xff] %v735
    %792 = vst [vmem:[#allocation11 + $0x18] sm:$0xff] %v738
    %793 = vst [vmem:[#allocation11 + $0x20] sm:$0xff] %v743
    %794 = vst [vmem:[#allocation11 + $0x28] sm:$0xff] %v746
    %795 = vst [vmem:[#allocation11 + $0x30] sm:$0xff] %v751
    %796 = vst [vmem:[#allocation11 + $0x38] sm:$0xff] %v754
    %797 = vst [vmem:[#allocation11 + $0x40] sm:$0xff] %v759
    %798 = vst [vmem:[#allocation11 + $0x48] sm:$0xff] %v762
    %799 = vst [vmem:[#allocation11 + $0x50] sm:$0xff] %v767
    %800 = vst [vmem:[#allocation11 + $0x58] sm:$0xff] %v770
    %801 = vst [vmem:[#allocation11 + $0x60] sm:$0xff] %v775
    %802 = vst [vmem:[#allocation11 + $0x68] sm:$0xff] %v778
    %803 = vst [vmem:[#allocation11 + $0x70] sm:$0xff] %v783
    %804 = vst [vmem:[#allocation11 + $0x78] sm:$0xff] %v786
    // Predicated region
    $region46: #{gcn_forward.1} parent=1 // pred_check
      _
    $region47: #{gcn_forward.1} parent=1 // pred_check_branch
      %806 = sbr.rel (0) target = $region49
    $region48: #{gcn_forward.1} parent=1 // pred_region
      %s808 = ssub.s32 2048, 2048
      %809 = vsyncadd [#allocation4], %s808
      %s810 = sshll.u32 [#allocation11], 4
      %s811 = int_to_ptr.vmem [resolvable:$true] %s810
      %816 = dma.vmem_to_hbm [thread:$0]  %s811, 2048, %s6, [#allocation4], 128, 128, 8
    $region49: #{gcn_forward.1} parent=1 // pred_fallthru
      _
    // Predicated region
    $region50: #{gcn_forward.1} parent=1 // pred_check
      _
    $region51: #{gcn_forward.1} parent=1 // pred_check_branch
      %818 = sbr.rel (0) target = $region53
    $region52: #{gcn_forward.1} parent=1 // pred_region
      %819 = dma.done [#allocation4], 2048
    $region53: #{gcn_forward.1} parent=1 // pred_fallthru
      _
    %820 = vsyncpa [#allocation3], 1
    %821 = vsyncpa [#allocation6], 1
    %822 = vsyncpa [#allocation9], 1
    %823 = vsyncpa [#allocation4], 1

</llo_original>
